<compile_context>
chip_gen: v5e
topology: v5e:2x2
jax: 0.10.0
libtpu: 0.0.40
codegen_flags: <defaults>
</compile_context>

<pallas_src>
import functools
import math

import jax
import jax.numpy as jnp
from jax.experimental import pallas as pl
from jax.experimental.pallas import tpu as pltpu


def _ce_kernel(labels_ref, logits_ref, loss_ref, m_ref, l_ref, pick_ref, *,
               c_total, tile_c, need_c_mask, use_bf16_exp):
    """Online-softmax per-sample cross entropy for one (row tile, class block).

    labels_ref: (TILE_N, 1) int32 VMEM
    logits_ref: (TILE_N, TILE_C) native dtype VMEM
    loss_ref:   (TILE_N, 1) float32 VMEM (written on the last class block)
    m_ref/l_ref/pick_ref: (TILE_N, 1) float32 VMEM scratch (running max / running
    rescaled exp-sum / raw logit at the label column).
    """
    k = pl.program_id(1)

    @pl.when(k == 0)
    def _():
        m_ref[...] = jnp.full_like(m_ref, -jnp.inf)
        l_ref[...] = jnp.zeros_like(l_ref)
        pick_ref[...] = jnp.zeros_like(pick_ref)

    logits = logits_ref[...].astype(jnp.float32)                    # (T, TC) f32
    labels = labels_ref[...]                                        # (T, 1) int32
    col = jax.lax.broadcasted_iota(jnp.int32, logits.shape, 1) + k * tile_c

    if need_c_mask:
        # Ragged last class block: padded columns must not contribute to the lse.
        logits = jnp.where(col < c_total, logits, -jnp.inf)

    # Raw logit at the label column (independent of the running max), accumulated
    # across class blocks.  Out-of-range labels match nothing -> contribute 0.
    pick_ref[...] += jnp.sum(jnp.where(col == labels, logits, 0.0),
                             axis=-1, keepdims=True)                # (T, 1)

    m_prev = m_ref[...]
    m_new = jnp.maximum(m_prev, jnp.max(logits, axis=-1, keepdims=True))
    shifted = logits - m_new                                        # <= 0 everywhere
    if use_bf16_exp:
        # v7x: the single EUP (not HBM @ 3.2 TB/s) is the binding unit; bf16 exp
        # roughly doubles its throughput.  Accumulation stays in f32.
        p = jnp.exp(shifted.astype(jnp.bfloat16)).astype(jnp.float32)
    else:
        p = jnp.exp(shifted)
    alpha = jnp.exp(m_prev - m_new)                                 # 0 at k == 0
    l_ref[...] = alpha * l_ref[...] + jnp.sum(p, axis=-1, keepdims=True)
    m_ref[...] = m_new

    @pl.when(k == pl.num_programs(1) - 1)
    def _():
        # loss = logsumexp(logits) - logit_label
        loss_ref[...] = m_ref[...] + jnp.log(l_ref[...]) - pick_ref[...]


def _choose_tiles(n, c, itemsize):
    """Pick (tile_n, tile_c) from the VMEM *working set*, not just the input tile.

    Per element of a tile step we account for:
      2 * itemsize   double-buffered native logits tile
      ~12 bytes      f32 cast + iota/where/exp elementwise temps
    A 16 MiB budget keeps ~16 MiB headroom under the 32 MiB scoped-VMEM limit
    on every generation (v7x has only 64 MiB physical per TC).
    """
    budget = 16 * 1024 * 1024
    per_elem = 2 * itemsize + 12

    def rows_for(tc):
        per_row = tc * per_elem + 64        # + labels / scratch slack
        return (budget // per_row) // 8 * 8

    n_pad = max(8, ((n + 7) // 8) * 8)

    # Prefer keeping all classes resident (single reduction step over C).
    tile_c = c
    rows = rows_for(tile_c)
    if rows < 8:
        # Vocab-scale C: block the class dim and reduce with online softmax.
        tile_c = 2048
        while tile_c > 128 and rows_for(tile_c) < 8:
            tile_c //= 2
        rows = rows_for(tile_c)

    tile_n = min(512, max(8, rows), n_pad)
    # v7x megacore: guarantee >=2 row tiles whenever N allows it, so the
    # "parallel" grid axis actually feeds both TensorCores.
    if n >= 16:
        half = (((n + 1) // 2) + 7) // 8 * 8
        tile_n = min(tile_n, half)
    return tile_n, tile_c


def _is_v7x():
    try:
        kind = jax.devices()[0].device_kind.lower()
    except Exception:
        return False
    return ("v7" in kind) or ("7x" in kind)


def per_sample_cross_entropy(logits, labels):
    """logits: (N, C) float32/bfloat16, labels: (N,) int -> (N,) float32 per-sample CE."""
    n, c = logits.shape
    itemsize = jnp.dtype(logits.dtype).itemsize
    tile_n, tile_c = _choose_tiles(n, c, itemsize)
    num_row_tiles = pl.cdiv(n, tile_n)
    num_c_tiles = pl.cdiv(c, tile_c)
    need_c_mask = (num_c_tiles * tile_c) != c
    use_bf16_exp = _is_v7x()   # only where the EUP, not HBM, is the binding unit

    labels_2d = labels.astype(jnp.int32).reshape(n, 1)

    kernel = functools.partial(
        _ce_kernel, c_total=c, tile_c=tile_c,
        need_c_mask=need_c_mask, use_bf16_exp=use_bf16_exp)

    cost = pl.CostEstimate(
        flops=4 * n * c,
        transcendentals=n * c + n,
        bytes_accessed=n * c * itemsize + 2 * n * 4,
    )

    loss_col = pl.pallas_call(
        kernel,
        out_shape=jax.ShapeDtypeStruct((n, 1), jnp.float32),
        grid=(num_row_tiles, num_c_tiles),
        in_specs=[
            pl.BlockSpec((tile_n, 1), lambda i, k: (i, 0)),        # labels tile
            pl.BlockSpec((tile_n, tile_c), lambda i, k: (i, k)),   # logits (native dtype)
        ],
        out_specs=pl.BlockSpec((tile_n, 1), lambda i, k: (i, 0)),
        scratch_shapes=[
            pltpu.VMEM((tile_n, 1), jnp.float32),   # running max m
            pltpu.VMEM((tile_n, 1), jnp.float32),   # running exp-sum l
            pltpu.VMEM((tile_n, 1), jnp.float32),   # raw logit at label
        ],
        compiler_params=pltpu.CompilerParams(
            dimension_semantics=("parallel", "arbitrary"),
            vmem_limit_bytes=32 * 1024 * 1024,
        ),
        cost_estimate=cost,
    )(labels_2d, logits)

    return loss_col[:, 0]


@functools.partial(jax.jit, static_argnames=("q",))
def quantile_cross_entropy_loss(outputs, labels, q):
    """JAX/Pallas equivalent of Quantile_CrossEntropyLoss(q).forward(outputs, labels)."""
    if not (0.0 <= float(q) <= 1.0):
        raise ValueError(f"q must lie in [0, 1], got {q}")
    loss = per_sample_cross_entropy(outputs, labels)       # (N,)
    sorted_loss = jnp.sort(loss)                           # tiny O(N) glue
    # torch.quantile default ('linear') interpolation; q is static Python, so the
    # index arithmetic happens at trace time.
    n = sorted_loss.shape[0]
    pos = float(q) * (n - 1)
    lo = int(math.floor(pos))
    hi = min(lo + 1, n - 1)
    frac = pos - lo
    return sorted_loss[lo] * (1.0 - frac) + sorted_loss[hi] * frac


def _reference_quantile_ce(outputs, labels, q):
    logp = jax.nn.log_softmax(outputs.astype(jnp.float32), axis=-1)
    loss = -logp[jnp.arange(outputs.shape[0]), labels]
    return jnp.quantile(jnp.sort(loss), q, method="linear")


if __name__ == "__main__":
    key = jax.random.PRNGKey(0)
    tol = 2e-2 if _is_v7x() else 1e-5   # bf16-exp path (v7x only) is looser

    # Primary small case, matching the module's (batch, classes) usage.
    k_logits, k_labels = jax.random.split(key)
    N, C = 8, 32
    outputs = jax.random.normal(k_logits, (N, C), dtype=jnp.float32)
    labels = jax.random.randint(k_labels, (N,), 0, C, dtype=jnp.int32)
    q = 0.7
    result = quantile_cross_entropy_loss(outputs, labels, q)
    jax.block_until_ready(result)
    ref = _reference_quantile_ce(outputs, labels, q)
    assert jnp.allclose(result, ref, atol=tol, rtol=tol), (result, ref)

    # Second case exercising >=2 row tiles and a ragged last row block (no padding).
    k2a, k2b = jax.random.split(jax.random.PRNGKey(1))
    N2, C2 = 20, 64
    outputs2 = jax.random.normal(k2a, (N2, C2), dtype=jnp.float32)
    labels2 = jax.random.randint(k2b, (N2,), 0, C2, dtype=jnp.int32)
    result2 = quantile_cross_entropy_loss(outputs2, labels2, 0.25)
    jax.block_until_ready(result2)
    ref2 = _reference_quantile_ce(outputs2, labels2, 0.25)
    assert jnp.allclose(result2, ref2, atol=tol, rtol=tol), (result2, ref2)

    print("KERNEL_OK")
</pallas_src>

<mosaic_0001>
module attributes {stable_mosaic.version = 11 : i64} {
  func.func @_ce_kernel(%arg0: i32, %arg1: i32, %arg2: memref<8x1xi32, #tpu.memory_space<vmem>>, %arg3: memref<8x32xf32, #tpu.memory_space<vmem>>, %arg4: memref<8x1xf32, #tpu.memory_space<vmem>>, %arg5: memref<8x1xf32, #tpu.memory_space<vmem>>, %arg6: memref<8x1xf32, #tpu.memory_space<vmem>>, %arg7: memref<8x1xf32, #tpu.memory_space<vmem>>) attributes {dimension_semantics = [#tpu.dimension_semantics<parallel>, #tpu.dimension_semantics<arbitrary>], iteration_bounds = array<i64: 1, 1>, scalar_prefetch = 0 : i64, scratch_operands = 3 : i64, tpu.core_type = #tpu.core_type<tc>, window_params = [{transform_indices = @transform_0, window_bounds = array<i64: 8, 1>}, {transform_indices = @transform_1, window_bounds = array<i64: 8, 32>}, {transform_indices = @transform_2, window_bounds = array<i64: 8, 1>}]} {
    %c0_i32 = arith.constant 0 : i32
    %0 = arith.cmpi eq, %arg1, %c0_i32 : i32
    %1 = arith.extui %0 : i1 to i32
    %c0_i32_0 = arith.constant 0 : i32
    %2 = arith.cmpi ne, %1, %c0_i32_0 : i32
    scf.if %2 {
      %cst_21 = arith.constant 0xFF800000 : f32
      %37 = vector.broadcast %cst_21 : f32 to vector<8x1xf32>
      %c0_22 = arith.constant 0 : index
      %c0_23 = arith.constant 0 : index
      %38 = vector.load %arg5[%c0_22, %c0_23] : memref<8x1xf32, #tpu.memory_space<vmem>>, vector<8x1xf32>
      tpu.vector_store %arg5[%c0_22, %c0_23], %37 {strides = array<i32>} : memref<8x1xf32, #tpu.memory_space<vmem>>, vector<8x1xf32>,
      %cst_24 = arith.constant 0.000000e+00 : f32
      %39 = vector.broadcast %cst_24 : f32 to vector<8x1xf32>
      %c0_25 = arith.constant 0 : index
      %c0_26 = arith.constant 0 : index
      %40 = vector.load %arg6[%c0_25, %c0_26] : memref<8x1xf32, #tpu.memory_space<vmem>>, vector<8x1xf32>
      tpu.vector_store %arg6[%c0_25, %c0_26], %39 {strides = array<i32>} : memref<8x1xf32, #tpu.memory_space<vmem>>, vector<8x1xf32>,
      %cst_27 = arith.constant 0.000000e+00 : f32
      %41 = vector.broadcast %cst_27 : f32 to vector<8x1xf32>
      %c0_28 = arith.constant 0 : index
      %c0_29 = arith.constant 0 : index
      %42 = vector.load %arg7[%c0_28, %c0_29] : memref<8x1xf32, #tpu.memory_space<vmem>>, vector<8x1xf32>
      tpu.vector_store %arg7[%c0_28, %c0_29], %41 {strides = array<i32>} : memref<8x1xf32, #tpu.memory_space<vmem>>, vector<8x1xf32>,
    } else {
    }
    %c0 = arith.constant 0 : index
    %c0_1 = arith.constant 0 : index
    %3 = vector.load %arg3[%c0, %c0_1] : memref<8x32xf32, #tpu.memory_space<vmem>>, vector<8x32xf32>
    %c0_2 = arith.constant 0 : index
    %c0_3 = arith.constant 0 : index
    %4 = vector.load %arg2[%c0_2, %c0_3] : memref<8x1xi32, #tpu.memory_space<vmem>>, vector<8x1xi32>
    %5 = tpu.iota {dimensions = array<i32: 1>} : vector<8x32xi32>
    %c32_i32 = arith.constant 32 : i32
    %6 = arith.muli %arg1, %c32_i32 : i32
    %7 = vector.broadcast %6 : i32 to vector<8x32xi32>
    %8 = arith.addi %5, %7 : vector<8x32xi32>
    %c0_4 = arith.constant 0 : index
    %c0_5 = arith.constant 0 : index
    %9 = vector.load %arg7[%c0_4, %c0_5] : memref<8x1xf32, #tpu.memory_space<vmem>>, vector<8x1xf32>
    %10 = vector.broadcast %4 : vector<8x1xi32> to vector<8x32xi32>
    %11 = arith.cmpi eq, %8, %10 : vector<8x32xi32>
    %cst = arith.constant 0.000000e+00 : f32
    %12 = vector.broadcast %cst : f32 to vector<8x32xf32>
    %13 = arith.select %11, %3, %12 : vector<8x32xi1>, vector<8x32xf32>
    %cst_6 = arith.constant dense<0.000000e+00> : vector<8xf32>
    %14 = vector.multi_reduction <add>, %13, %cst_6 [1] : vector<8x32xf32> to vector<8xf32>
    %15 = vector.shape_cast %14 : vector<8xf32> to vector<8x1xf32>
    %16 = arith.addf %9, %15 : vector<8x1xf32>
    %c0_7 = arith.constant 0 : index
    %c0_8 = arith.constant 0 : index
    %17 = vector.load %arg7[%c0_7, %c0_8] : memref<8x1xf32, #tpu.memory_space<vmem>>, vector<8x1xf32>
    tpu.vector_store %arg7[%c0_7, %c0_8], %16 {strides = array<i32>} : memref<8x1xf32, #tpu.memory_space<vmem>>, vector<8x1xf32>,
    %c0_9 = arith.constant 0 : index
    %c0_10 = arith.constant 0 : index
    %18 = vector.load %arg5[%c0_9, %c0_10] : memref<8x1xf32, #tpu.memory_space<vmem>>, vector<8x1xf32>
    %cst_11 = arith.constant dense<0xFF800000> : vector<8xf32>
    %19 = vector.multi_reduction <maximumf>, %3, %cst_11 [1] : vector<8x32xf32> to vector<8xf32>
    %20 = vector.shape_cast %19 : vector<8xf32> to vector<8x1xf32>
    %21 = arith.maximumf %18, %20 : vector<8x1xf32>
    %22 = vector.broadcast %21 : vector<8x1xf32> to vector<8x32xf32>
    %23 = arith.subf %3, %22 : vector<8x32xf32>
    %24 = math.exp %23 : vector<8x32xf32>
    %25 = arith.subf %18, %21 : vector<8x1xf32>
    %26 = math.exp %25 : vector<8x1xf32>
    %c0_12 = arith.constant 0 : index
    %c0_13 = arith.constant 0 : index
    %27 = vector.load %arg6[%c0_12, %c0_13] : memref<8x1xf32, #tpu.memory_space<vmem>>, vector<8x1xf32>
    %28 = arith.mulf %26, %27 : vector<8x1xf32>
    %cst_14 = arith.constant dense<0.000000e+00> : vector<8xf32>
    %29 = vector.multi_reduction <add>, %24, %cst_14 [1] : vector<8x32xf32> to vector<8xf32>
    %30 = vector.shape_cast %29 : vector<8xf32> to vector<8x1xf32>
    %31 = arith.addf %28, %30 : vector<8x1xf32>
    %c0_15 = arith.constant 0 : index
    %c0_16 = arith.constant 0 : index
    %32 = vector.load %arg6[%c0_15, %c0_16] : memref<8x1xf32, #tpu.memory_space<vmem>>, vector<8x1xf32>
    tpu.vector_store %arg6[%c0_15, %c0_16], %31 {strides = array<i32>} : memref<8x1xf32, #tpu.memory_space<vmem>>, vector<8x1xf32>,
    %c0_17 = arith.constant 0 : index
    %c0_18 = arith.constant 0 : index
    %33 = vector.load %arg5[%c0_17, %c0_18] : memref<8x1xf32, #tpu.memory_space<vmem>>, vector<8x1xf32>
    tpu.vector_store %arg5[%c0_17, %c0_18], %21 {strides = array<i32>} : memref<8x1xf32, #tpu.memory_space<vmem>>, vector<8x1xf32>,
    %c0_i32_19 = arith.constant 0 : i32
    %34 = arith.cmpi eq, %arg1, %c0_i32_19 : i32
    %35 = arith.extui %34 : i1 to i32
    %c0_i32_20 = arith.constant 0 : i32
    %36 = arith.cmpi ne, %35, %c0_i32_20 : i32
    scf.if %36 {
      %c0_21 = arith.constant 0 : index
      %c0_22 = arith.constant 0 : index
      %37 = vector.load %arg5[%c0_21, %c0_22] : memref<8x1xf32, #tpu.memory_space<vmem>>, vector<8x1xf32>
      %c0_23 = arith.constant 0 : index
      %c0_24 = arith.constant 0 : index
      %38 = vector.load %arg6[%c0_23, %c0_24] : memref<8x1xf32, #tpu.memory_space<vmem>>, vector<8x1xf32>
      %39 = math.log %38 : vector<8x1xf32>
      %40 = arith.addf %37, %39 : vector<8x1xf32>
      %c0_25 = arith.constant 0 : index
      %c0_26 = arith.constant 0 : index
      %41 = vector.load %arg7[%c0_25, %c0_26] : memref<8x1xf32, #tpu.memory_space<vmem>>, vector<8x1xf32>
      %42 = arith.subf %40, %41 : vector<8x1xf32>
      %c0_27 = arith.constant 0 : index
      %c0_28 = arith.constant 0 : index
      %43 = vector.load %arg4[%c0_27, %c0_28] : memref<8x1xf32, #tpu.memory_space<vmem>>, vector<8x1xf32>
      tpu.vector_store %arg4[%c0_27, %c0_28], %42 {strides = array<i32>} : memref<8x1xf32, #tpu.memory_space<vmem>>, vector<8x1xf32>,
    } else {
    }
    return
  }
  func.func @transform_0(%arg0: i32, %arg1: i32) -> (i32, i32) {
    %c0_i32 = arith.constant 0 : i32
    %c0_i32_0 = arith.constant 0 : i32
    return %arg0, %c0_i32 : i32, i32
  }
  func.func @transform_1(%arg0: i32, %arg1: i32) -> (i32, i32) {
    %c0_i32 = arith.constant 0 : i32
    return %arg0, %arg1 : i32, i32
  }
  func.func @transform_2(%arg0: i32, %arg1: i32) -> (i32, i32) {
    %c0_i32 = arith.constant 0 : i32
    %c0_i32_0 = arith.constant 0 : i32
    return %arg0, %c0_i32 : i32, i32
  }
}

</mosaic_0001>

<llo_original>
// kernel: quantile_cross_entropy_loss.1
$region0: #{quantile_cross_entropy_loss.1}
  #allocation0 [shape = 'u32[]', space=smem, size = 0x4, offset = 0x4, fixed_abs, tag = 'smem constant byte address 0x4 - core index']
  #allocation1 [shape = 'u32[72,128]{1,0:T(1,128)}', space=vmem, size = 0x9000, scoped, tag = 'internal scratch']
  #allocation2 [shape = 'f32[8,1]{1,0:T(8,128)}', space=vmem, size = 0x1000, scoped, tag = 'scratch operand']
  #allocation3 [shape = 'f32[8,1]{1,0:T(8,128)}', space=vmem, size = 0x1000, scoped, tag = 'scratch operand']
  #allocation4 [shape = 'f32[8,1]{1,0:T(8,128)}', space=vmem, size = 0x1000, scoped, tag = 'scratch operand']
  %s0 = inlined_call_operand.vmem [shape: s32[8,1], index: 0, kind: input, shape index: {}]
  %s1 = inlined_call_operand.vmem [shape: f32[8,32], index: 1, kind: input, shape index: {}]
  %s2 = inlined_call_operand.vmem [shape: f32[8,1], index: 2, kind: output, shape index: {}]
  %s3 = sld [smem:[#allocation0]]
  $region26: #{quantile_cross_entropy_loss.1} parent=0
    _
  %s5 = ssub.s32 1, %s3
  %s6 = scalar_select 0, %s5, %s3
  // Predicated region
  $region2: #{quantile_cross_entropy_loss.1} parent=0 // pred_check
    _
  $region3: #{quantile_cross_entropy_loss.1} parent=0 // pred_check_branch
    %8 = sbr.rel (0) target = $region5
  $region4: #{quantile_cross_entropy_loss.1} parent=0 // pred_region
    _
  $region5: #{quantile_cross_entropy_loss.1} parent=0 // pred_fallthru
    _
  // Predicated region
  $region6: #{quantile_cross_entropy_loss.1} parent=0 // pred_check
    _
  $region7: #{quantile_cross_entropy_loss.1} parent=0 // pred_check_branch
    %10 = sbr.rel (0) target = $region9
  $region8: #{quantile_cross_entropy_loss.1} parent=0 // pred_region
    _
  $region9: #{quantile_cross_entropy_loss.1} parent=0 // pred_fallthru
    _
  %p11 = scmp.eq.s32.totalorder 0, 0
  // Predicated region
  $region10: #{quantile_cross_entropy_loss.1} parent=0 // pred_check
    %p12 = pneg %p11
  $region11: #{quantile_cross_entropy_loss.1} parent=0 // pred_check_branch
    %14 = sbr.rel (%p12) target = $region13
  $region12: #{quantile_cross_entropy_loss.1} parent=0 // pred_region
    %vm15 = vcmask 7168
    %16 = vst.msk [vmem:[#allocation2] sm:$0xff] %vm15, -inf
    %17 = vst.msk [vmem:[#allocation3] sm:$0xff] %vm15, 0.0
    %18 = vst.msk [vmem:[#allocation4] sm:$0xff] %vm15, 0.0
  $region13: #{quantile_cross_entropy_loss.1} parent=0 // pred_fallthru
    _
  %v19 = vld [vmem:[%s1] sm:$0xff]
  %v20 = vld [vmem:[%s0] sm:$0xff]
  %v21 = vlaneseq
  %v22 = vand.u32 %v21, 127
  %s23 = smul.u32 0, 32
  %v24 = vstv %s23
  %v25 = vadd.s32 %v22, %v24
  %v26 = vld [vmem:[#allocation4] sm:$0xff]
  %27 = vset.pattern.permute.xlu0 0
  %28 = vperm.xlu0 %27, %v20
  %v29 = vpop.permute.xlu0 %28
  %vm30 = vcmp.eq.s32.totalorder %v25, %v29
  %v31 = vsel %vm30, %v19, 0.0
  %vm32 = vcmask 261120
  %v33 = vsel %vm32, %v31, 0.0
  %34 = vadd.xlane.f32.xlu0 %v33
  %v35 = vpop.xlane.xlu0 %34
  %v36 = vadd.f32 %v26, %v35
  %vm37 = vcmask 7168
  %38 = vst.msk [vmem:[#allocation4] sm:$0xff] %vm37, %v36
  %v39 = vld [vmem:[#allocation2] sm:$0xff]
  %v40 = vsel %vm32, %v19, -inf
  %41 = vmax.xlane.f32.xlu0 %v40
  %v42 = vpop.xlane.xlu0 %41
  %v43 = vmax.f32 %v39, %v42
  %45 = vset.pattern.permute.xlu0 0
  %46 = vperm.xlu0 %45, %v43
  %v47 = vpop.permute.xlu0 %46
  %v49 = vsub.f32 %v19, %v47
  %v50 = vmul.f32 %v49, 1.442695
  %v51 = vpow.pop %v50
  %v52 = vsub.f32 %v39, %v43
  %v53 = vmul.f32 %v52, 1.442695
  %v54 = vpow.pop %v53
  %v55 = vld [vmem:[#allocation3] sm:$0xff]
  %v56 = vmul.f32 %v54, %v55
  %v57 = vsel %vm32, %v51, 0.0
  %58 = vadd.xlane.f32.xlu0 %v57
  %v59 = vpop.xlane.xlu0 %58
  %v60 = vadd.f32 %v56, %v59
  %61 = vst.msk [vmem:[#allocation3] sm:$0xff] %vm37, %v60
  %62 = vst.msk [vmem:[#allocation2] sm:$0xff] %vm37, %v43
  // Predicated region
  $region14: #{quantile_cross_entropy_loss.1} parent=0 // pred_check
    %p63 = pneg %p11
  $region15: #{quantile_cross_entropy_loss.1} parent=0 // pred_check_branch
    %65 = sbr.rel (%p63) target = $region17
  $region16: #{quantile_cross_entropy_loss.1} parent=0 // pred_region
    %v66 = vld [vmem:[#allocation2] sm:$0xff]
    %v67 = vld [vmem:[#allocation3] sm:$0xff]
    %v68 = vlog2.pop %v67
    %v69 = vmul.f32 %v68, 0.6931472
    %v70 = vadd.f32 %v66, %v69
    %v71 = vld [vmem:[#allocation4] sm:$0xff]
    %v72 = vsub.f32 %v70, %v71
    %73 = vst.msk [vmem:[%s2] sm:$0xff] %vm37, %v72
  $region17: #{quantile_cross_entropy_loss.1} parent=0 // pred_fallthru
    _
  // Predicated region
  $region18: #{quantile_cross_entropy_loss.1} parent=0 // pred_check
    _
  $region19: #{quantile_cross_entropy_loss.1} parent=0 // pred_check_branch
    %75 = sbr.rel (0) target = $region21
  $region20: #{quantile_cross_entropy_loss.1} parent=0 // pred_region
    _
  $region21: #{quantile_cross_entropy_loss.1} parent=0 // pred_fallthru
    _
  // Predicated region
  $region22: #{quantile_cross_entropy_loss.1} parent=0 // pred_check
    _
  $region23: #{quantile_cross_entropy_loss.1} parent=0 // pred_check_branch
    %77 = sbr.rel (0) target = $region25
  $region24: #{quantile_cross_entropy_loss.1} parent=0 // pred_region
    _
  $region25: #{quantile_cross_entropy_loss.1} parent=0 // pred_fallthru
    _

</llo_original>
